<compile_context>
chip_gen: v7x
topology: tpu7x:2x2x1
jax: 0.10.0
libtpu: 0.0.40
codegen_flags: <defaults>
</compile_context>

<pallas_src>
import jax
import jax.numpy as jnp
from jax.experimental import pallas as pl
from jax.experimental.pallas import tpu as pltpu


# Target block sizes for f32: 512 x 1024 = 2 MiB per block buffer.
_BLOCK_ROWS = 512   # multiple of 8   (sublanes)
_BLOCK_COLS = 1024  # multiple of 128 (lanes)


def _rprelu_kernel(x_ref, bx_ref, alpha_ref, by_ref, o_ref):
    x = x_ref[...]          # (BR, BC)
    bx = bx_ref[...]        # (BR, 1)  shift_x bias (per row / channel)
    alpha = alpha_ref[...]  # (BR, 1)  PReLU negative slope
    by = by_ref[...]        # (BR, 1)  shift_y bias

    z = x + bx
    # PReLU: z for z >= 0, alpha * z for z < 0 (matches torch.nn.PReLU).
    out = jnp.where(z >= 0, z, alpha * z) + by
    o_ref[...] = out.astype(o_ref.dtype)


def _pick_block(dim: int, target: int) -> int:
    # A block dim equal to the full array dim is always legal; otherwise keep the
    # (8,128)-aligned target and let the cdiv grid cover the remainder.
    return dim if dim <= target else target


def rprelu(x: jax.Array, bias_x: jax.Array, alpha: jax.Array,
           bias_y: jax.Array) -> jax.Array:
    """RPReLU forward: shift_y(PReLU(shift_x(x))) on an NCHW tensor.

    bias_x / alpha / bias_y each hold one value per channel (any shape with C
    elements, e.g. (1, C, 1, 1) like the PyTorch parameters).
    """
    N, C, H, W = x.shape
    rows, cols = N * C, H * W
    dtype = x.dtype

    # Lane-dense 2-D view: one row per (n, c) pair, spatial dim along lanes.
    x2d = x.reshape(rows, cols)

    # Expand tiny per-channel params to per-row columns (row r -> channel r % C).
    def per_row(p):
        p = p.reshape(-1).astype(dtype)
        return jnp.broadcast_to(p[None, :], (N, C)).reshape(rows, 1)

    bx_r = per_row(bias_x)
    al_r = per_row(alpha)
    by_r = per_row(bias_y)

    br = _pick_block(rows, _BLOCK_ROWS)
    bc = _pick_block(cols, _BLOCK_COLS)
    grid = (pl.cdiv(rows, br), pl.cdiv(cols, bc))

    out2d = pl.pallas_call(
        _rprelu_kernel,
        out_shape=jax.ShapeDtypeStruct((rows, cols), dtype),
        grid_spec=pltpu.PrefetchScalarGridSpec(
            num_scalar_prefetch=0,
            grid=grid,
            in_specs=[
                pl.BlockSpec((br, bc), lambda i, j: (i, j)),
                pl.BlockSpec((br, 1), lambda i, j: (i, 0)),
                pl.BlockSpec((br, 1), lambda i, j: (i, 0)),
                pl.BlockSpec((br, 1), lambda i, j: (i, 0)),
            ],
            out_specs=pl.BlockSpec((br, bc), lambda i, j: (i, j)),
        ),
        compiler_params=pltpu.CompilerParams(
            dimension_semantics=("parallel", "parallel")),
    )(x2d, bx_r, al_r, by_r)

    return out2d.reshape(N, C, H, W)


if __name__ == "__main__":
    key = jax.random.PRNGKey(0)
    kx, kb1, ka, kb2 = jax.random.split(key, 4)

    # Small NCHW shape: batch=2, channels=4, spatial=16x16.
    N, C, H, W = 2, 4, 16, 16
    x = jax.random.normal(kx, (N, C, H, W), dtype=jnp.float32)
    # PyTorch init is bias=0, alpha=0.25; use random values so the per-channel
    # parameter path is actually exercised.
    bias_x = 0.1 * jax.random.normal(kb1, (1, C, 1, 1), dtype=jnp.float32)
    alpha = 0.25 + 0.05 * jax.random.normal(ka, (C,), dtype=jnp.float32)
    bias_y = 0.1 * jax.random.normal(kb2, (1, C, 1, 1), dtype=jnp.float32)

    out = rprelu(x, bias_x, alpha, bias_y)
    out = jax.block_until_ready(out)

    # Pure-JAX reference.
    z = x + bias_x
    a = alpha.reshape(1, C, 1, 1)
    ref = jnp.where(z >= 0, z, a * z) + bias_y.reshape(1, C, 1, 1)

    assert out.shape == x.shape
    assert out.dtype == x.dtype
    assert bool(jnp.allclose(out, ref, rtol=1e-6, atol=1e-6)), \
        "mismatch vs reference RPReLU"
    print("KERNEL_OK")
</pallas_src>

<mosaic_0001>
module attributes {stable_mosaic.version = 11 : i64} {
  func.func @_rprelu_kernel(%arg0: i32, %arg1: i32, %arg2: memref<8x256xf32, #tpu.memory_space<vmem>>, %arg3: memref<8x1xf32, #tpu.memory_space<vmem>>, %arg4: memref<8x1xf32, #tpu.memory_space<vmem>>, %arg5: memref<8x1xf32, #tpu.memory_space<vmem>>, %arg6: memref<8x256xf32, #tpu.memory_space<vmem>>) attributes {dimension_semantics = [#tpu.dimension_semantics<parallel>, #tpu.dimension_semantics<parallel>], iteration_bounds = array<i64: 1, 1>, scalar_prefetch = 0 : i64, scratch_operands = 0 : i64, tpu.core_type = #tpu.core_type<tc>, window_params = [{transform_indices = @transform_0, window_bounds = array<i64: 8, 256>}, {transform_indices = @transform_1, window_bounds = array<i64: 8, 1>}, {transform_indices = @transform_2, window_bounds = array<i64: 8, 1>}, {transform_indices = @transform_3, window_bounds = array<i64: 8, 1>}, {transform_indices = @transform_4, window_bounds = array<i64: 8, 256>}]} {
    %c0 = arith.constant 0 : index
    %c0_0 = arith.constant 0 : index
    %0 = vector.load %arg2[%c0, %c0_0] : memref<8x256xf32, #tpu.memory_space<vmem>>, vector<8x256xf32>
    %c0_1 = arith.constant 0 : index
    %c0_2 = arith.constant 0 : index
    %1 = vector.load %arg3[%c0_1, %c0_2] : memref<8x1xf32, #tpu.memory_space<vmem>>, vector<8x1xf32>
    %c0_3 = arith.constant 0 : index
    %c0_4 = arith.constant 0 : index
    %2 = vector.load %arg4[%c0_3, %c0_4] : memref<8x1xf32, #tpu.memory_space<vmem>>, vector<8x1xf32>
    %c0_5 = arith.constant 0 : index
    %c0_6 = arith.constant 0 : index
    %3 = vector.load %arg5[%c0_5, %c0_6] : memref<8x1xf32, #tpu.memory_space<vmem>>, vector<8x1xf32>
    %4 = vector.broadcast %1 : vector<8x1xf32> to vector<8x256xf32>
    %5 = arith.addf %0, %4 : vector<8x256xf32>
    %cst = arith.constant 0.000000e+00 : f32
    %6 = vector.broadcast %cst : f32 to vector<8x256xf32>
    %7 = arith.cmpf oge, %5, %6 : vector<8x256xf32>
    %8 = vector.broadcast %2 : vector<8x1xf32> to vector<8x256xf32>
    %9 = arith.mulf %8, %5 : vector<8x256xf32>
    %10 = arith.select %7, %5, %9 : vector<8x256xi1>, vector<8x256xf32>
    %11 = vector.broadcast %3 : vector<8x1xf32> to vector<8x256xf32>
    %12 = arith.addf %10, %11 : vector<8x256xf32>
    %c0_7 = arith.constant 0 : index
    %c0_8 = arith.constant 0 : index
    %13 = vector.load %arg6[%c0_7, %c0_8] : memref<8x256xf32, #tpu.memory_space<vmem>>, vector<8x256xf32>
    tpu.vector_store %arg6[%c0_7, %c0_8], %12 {strides = array<i32>} : memref<8x256xf32, #tpu.memory_space<vmem>>, vector<8x256xf32>,
    return
  }
  func.func @transform_0(%arg0: i32, %arg1: i32) -> (i32, i32) {
    %c0_i32 = arith.constant 0 : i32
    return %arg0, %arg1 : i32, i32
  }
  func.func @transform_1(%arg0: i32, %arg1: i32) -> (i32, i32) {
    %c0_i32 = arith.constant 0 : i32
    %c0_i32_0 = arith.constant 0 : i32
    return %arg0, %c0_i32 : i32, i32
  }
  func.func @transform_2(%arg0: i32, %arg1: i32) -> (i32, i32) {
    %c0_i32 = arith.constant 0 : i32
    %c0_i32_0 = arith.constant 0 : i32
    return %arg0, %c0_i32 : i32, i32
  }
  func.func @transform_3(%arg0: i32, %arg1: i32) -> (i32, i32) {
    %c0_i32 = arith.constant 0 : i32
    %c0_i32_0 = arith.constant 0 : i32
    return %arg0, %c0_i32 : i32, i32
  }
  func.func @transform_4(%arg0: i32, %arg1: i32) -> (i32, i32) {
    %c0_i32 = arith.constant 0 : i32
    return %arg0, %arg1 : i32, i32
  }
}

</mosaic_0001>

<llo_original>
// kernel: tpu_custom_call.1
$region0: #{tpu_custom_call.1}
  #allocation0 [shape = 'u32[]', space=smem, size = 0x4, offset = 0x4, fixed_abs, tag = 'smem constant byte address 0x4 - core index']
  #allocation1 [shape = 'u32[144,128]{1,0:T(1,128)}', space=vmem, size = 0x12000, scoped, tag = 'internal scratch']
  %s0 = inlined_call_operand.vmem [shape: f32[8,256], index: 0, kind: input, shape index: {}]
  %s1 = inlined_call_operand.vmem [shape: f32[8,1], index: 1, kind: input, shape index: {}]
  %s2 = inlined_call_operand.vmem [shape: f32[8,1], index: 2, kind: input, shape index: {}]
  %s3 = inlined_call_operand.vmem [shape: f32[8,1], index: 3, kind: input, shape index: {}]
  %s4 = inlined_call_operand.hbm [shape: f32[8,256], index: 4, kind: output, shape index: {}]
  %s5 = sld [smem:[#allocation0]]
  $region26: #{tpu_custom_call.1} parent=0
    _
  %s7 = ssub.s32 1, %s5
  %s8 = scalar_select 0, %s7, %s5
  $region1: #{tpu_custom_call.1} parent=0
    #allocation2 [shape = 'u8[8192]{0}', space=vmem, size = 0x2000, scoped, tag = 'output window, operand 0, single buffered']
    #allocation3 [shape = 's32[1]{0}', space=sflag, size = 0x4, scoped, tag = 'scoped memory for tpu_custom_call.1']
    %9 = vsyncpa [#allocation3], 0
    // Predicated region
    $region2: #{tpu_custom_call.1} parent=1 // pred_check
      _
    $region3: #{tpu_custom_call.1} parent=1 // pred_check_branch
      %11 = sbr.rel (0) target = $region5
    $region4: #{tpu_custom_call.1} parent=1 // pred_region
      _
    $region5: #{tpu_custom_call.1} parent=1 // pred_fallthru
      _
    // Predicated region
    $region6: #{tpu_custom_call.1} parent=1 // pred_check
      _
    $region7: #{tpu_custom_call.1} parent=1 // pred_check_branch
      %13 = sbr.rel (0) target = $region9
    $region8: #{tpu_custom_call.1} parent=1 // pred_region
      _
    $region9: #{tpu_custom_call.1} parent=1 // pred_fallthru
      _
    // Predicated region
    $region10: #{tpu_custom_call.1} parent=1 // pred_check
      _
    $region11: #{tpu_custom_call.1} parent=1 // pred_check_branch
      %15 = sbr.rel (0) target = $region13
    $region12: #{tpu_custom_call.1} parent=1 // pred_region
      _
    $region13: #{tpu_custom_call.1} parent=1 // pred_fallthru
      _
    // Predicated region
    $region14: #{tpu_custom_call.1} parent=1 // pred_check
      _
    $region15: #{tpu_custom_call.1} parent=1 // pred_check_branch
      %17 = sbr.rel (0) target = $region17
    $region16: #{tpu_custom_call.1} parent=1 // pred_region
      _
    $region17: #{tpu_custom_call.1} parent=1 // pred_fallthru
      _
    %v18 = vld [vmem:[%s0] sm:$0xff]
    %v19 = vld [vmem:[%s0 + $0x8] sm:$0xff]
    %v20 = vld [vmem:[%s1] sm:$0xff]
    %v21 = vld [vmem:[%s2] sm:$0xff]
    %v22 = vld [vmem:[%s3] sm:$0xff]
    %24 = vset.pattern.permute.xlu0 0
    %25 = vperm.xlu0 %24, %v20
    %v26 = vpop.permute.xlu0 %25
    %v28 = vadd.f32 %v18, %v26
    %v29 = vadd.f32 %v19, %v26
    %vm30 = vcmp.ge.f32.partialorder %v28, 0.0
    %vm31 = vcmp.ge.f32.partialorder %v29, 0.0
    %33 = vset.pattern.permute.xlu0 0
    %34 = vperm.xlu0 %33, %v21
    %v35 = vpop.permute.xlu0 %34
    %v37 = vmul.f32 %v35, %v28
    %v38 = vmul.f32 %v35, %v29
    %v39 = vsel %vm30, %v28, %v37
    %v40 = vsel %vm31, %v29, %v38
    %42 = vset.pattern.permute.xlu0 0
    %43 = vperm.xlu0 %42, %v22
    %v44 = vpop.permute.xlu0 %43
    %v46 = vadd.f32 %v39, %v44
    %v47 = vadd.f32 %v40, %v44
    %48 = vst [vmem:[#allocation2] sm:$0xff] %v46
    %49 = vst [vmem:[#allocation2 + $0x8] sm:$0xff] %v47
    // Predicated region
    $region18: #{tpu_custom_call.1} parent=1 // pred_check
      _
    $region19: #{tpu_custom_call.1} parent=1 // pred_check_branch
      %51 = sbr.rel (0) target = $region21
    $region20: #{tpu_custom_call.1} parent=1 // pred_region
      %s53 = ssub.s32 256, 256
      %54 = vsyncadd [#allocation3], %s53
      %s56 = sshll.u32 [#allocation2], 4
      %s57 = int_to_ptr.vmem [resolvable:$true] %s56
      %59 = dma.vmem_to_hbm [thread:$0]  %s57, 256, %s4, [#allocation3]
    $region21: #{tpu_custom_call.1} parent=1 // pred_fallthru
      _
    // Predicated region
    $region22: #{tpu_custom_call.1} parent=1 // pred_check
      _
    $region23: #{tpu_custom_call.1} parent=1 // pred_check_branch
      %61 = sbr.rel (0) target = $region25
    $region24: #{tpu_custom_call.1} parent=1 // pred_region
      %62 = dma.done [#allocation3], 256
    $region25: #{tpu_custom_call.1} parent=1 // pred_fallthru
      _
    %63 = vsyncpa [#allocation3], 1

</llo_original>
